<compile_context>
chip_gen: v6e
topology: v6e:2x2x1
jax: 0.10.0
libtpu: 0.0.40
codegen_flags: <defaults>
</compile_context>

<pallas_src>
import numpy as np
import jax
import jax.numpy as jnp
from jax import lax
from jax.experimental import pallas as pl
from jax.experimental.pallas import tpu as pltpu

LARGE_NUMBER = 10000.0
_NORM_EPS = 1e-12    # matches torch F.normalize(eps=1e-12)
_LOG_TINY = 1e-30    # guards 0*log(0): a zero-mass cluster contributes 0 here,
                     # whereas the torch reference would produce NaN/-inf.


def _round_up(x, m):
    return (x + m - 1) // m * m


def _make_cluster_loss_kernel(tau, num_clusters, num_tiles, block_b, batch_rows,
                              mxu_dtype, fuse_gram):
    K = num_clusters
    inv_sqrt_tau = float(1.0 / np.sqrt(tau))
    log_k = float(np.log(K))
    # Contract over the batch axis (axis 0) of both operands -> ci^T @ X with
    # no materialized transpose in VMEM.
    # NOTE(perf review item 9): if pl.lower_as_mlir ever shows per-step vxpose
    # of the (block_b, K) operands for this dim0 x dim0 contraction, restructure
    # so the transposed operand is MXU-stationary (pre-transpose once per tile).
    dn = (((0,), (0,)), ((), ()))
    rows_last = batch_rows - (num_tiles - 1) * block_b   # valid rows in tail tile
    ragged = rows_last != block_b

    def kernel(ci_ref, cj_ref, out_ref, *scratch):
        if fuse_gram:
            gtop_ref, gjj_ref, psi_ref, psj_ref, qsi_ref, qsj_ref = scratch
        else:
            gii_ref, gij_ref, gjj_ref, psi_ref, psj_ref, qsi_ref, qsj_ref = scratch

        step = pl.program_id(0)

        @pl.when(step == 0)
        def _init():
            for r in scratch:
                r[...] = jnp.zeros_like(r)

        ci = ci_ref[...]                                   # (TB, K) stream dtype
        cj = cj_ref[...]
        if ragged:
            # Mask the ragged tail tile in-kernel (no wrapper jnp.pad): the OOB
            # rows of the last block have unspecified contents and must be
            # zeroed before BOTH the column-sum statistics and the MXU operands.
            rows = lax.broadcasted_iota(jnp.int32, ci.shape, 0)
            limit = jnp.where(step == num_tiles - 1, rows_last, block_b)
            keep = rows < limit
            zero = jnp.zeros((), ci.dtype)
            ci = jnp.where(keep, ci, zero)
            cj = jnp.where(keep, cj, zero)

        # ---- streaming statistics (VPU sublane reduces, hidden under MXU/DMA)
        ci32 = ci.astype(jnp.float32)
        cj32 = cj.astype(jnp.float32)
        psi_ref[...] += jnp.sum(ci32, axis=0, keepdims=True)          # (1, K)
        psj_ref[...] += jnp.sum(cj32, axis=0, keepdims=True)
        # Row-oriented squared column norms, accumulated here so the finalize
        # never needs a cross-sublane K^2 reduce (or a transpose) for the row
        # orientation of the normalizers.
        qsi_ref[...] += jnp.sum(ci32 * ci32, axis=0, keepdims=True)   # (1, K)
        qsj_ref[...] += jnp.sum(cj32 * cj32, axis=0, keepdims=True)

        # ---- 2x2 block Gram accumulation on the MXU (f32 accumulate) --------
        a = ci.astype(mxu_dtype)
        b = cj.astype(mxu_dtype)
        if fuse_gram:
            # K is 128-aligned: one wide pass a^T @ [a|b] fills the 256-wide MXU
            # output and halves the latch/drain sequences per step.
            ab = jnp.concatenate([a, b], axis=1)           # (TB, 2K), lane-aligned
            gtop_ref[...] += lax.dot_general(a, ab, dimension_numbers=dn,
                                             preferred_element_type=jnp.float32)
            gjj_ref[...] += lax.dot_general(b, b, dimension_numbers=dn,
                                            preferred_element_type=jnp.float32)
        else:
            gii_ref[...] += lax.dot_general(a, a, dimension_numbers=dn,
                                            preferred_element_type=jnp.float32)
            gij_ref[...] += lax.dot_general(a, b, dimension_numbers=dn,
                                            preferred_element_type=jnp.float32)
            gjj_ref[...] += lax.dot_general(b, b, dimension_numbers=dn,
                                            preferred_element_type=jnp.float32)

        @pl.when(step == num_tiles - 1)
        def _finalize():
            if fuse_gram:
                gii = gtop_ref[:, pl.ds(0, K)]
                gij = gtop_ref[:, pl.ds(K, K)]
            else:
                gii = gii_ref[...]
                gij = gij_ref[...]
            gjj = gjj_ref[...]

            # ---- entropy regularizer: en_i + en_j ---------------------------
            pi = psi_ref[...]
            pi = pi / jnp.sum(pi)
            en_i = log_k + jnp.sum(pi * jnp.log(jnp.maximum(pi, _LOG_TINY)))
            pj = psj_ref[...]
            pj = pj / jnp.sum(pj)
            en_j = log_k + jnp.sum(pj * jnp.log(jnp.maximum(pj, _LOG_TINY)))
            en_loss = en_i + en_j

            # ---- contrastive term (blockwise, finalize-only) ----------------
            row = lax.broadcasted_iota(jnp.int32, (K, K), 0)
            col = lax.broadcasted_iota(jnp.int32, (K, K), 1)
            eye = row == col

            # Column-oriented norms straight from the Gram diagonals (one
            # lane-reduce per Gram); row-oriented norms come from the streamed
            # sum-of-squares accumulators -> only 2 K^2 reductions total.
            sq_i_col = jnp.sum(jnp.where(eye, gii, 0.0), axis=1, keepdims=True)
            sq_j_col = jnp.sum(jnp.where(eye, gjj, 0.0), axis=1, keepdims=True)
            inv_i_col = inv_sqrt_tau / jnp.maximum(jnp.sqrt(sq_i_col), _NORM_EPS)
            inv_j_col = inv_sqrt_tau / jnp.maximum(jnp.sqrt(sq_j_col), _NORM_EPS)
            inv_i_row = inv_sqrt_tau / jnp.maximum(jnp.sqrt(qsi_ref[...]), _NORM_EPS)
            inv_j_row = inv_sqrt_tau / jnp.maximum(jnp.sqrt(qsj_ref[...]), _NORM_EPS)

            l_ii = gii * (inv_i_col * inv_i_row)           # (K, K)
            l_ij = gij * (inv_i_col * inv_j_row)
            l_jj = gjj * (inv_j_col * inv_j_row)

            neg = jnp.float32(-LARGE_NUMBER)
            l_ii_m = jnp.where(eye, neg, l_ii)   # same diagonal semantics as torch
            l_jj_m = jnp.where(eye, neg, l_jj)

            # rows 0..K-1 of the (2K,2K) logits are [l_ii_m | l_ij]
            mx1 = jnp.maximum(jnp.max(l_ii_m, axis=1, keepdims=True),
                              jnp.max(l_ij, axis=1, keepdims=True))
            s1 = (jnp.sum(jnp.exp(l_ii_m - mx1), axis=1, keepdims=True)
                  + jnp.sum(jnp.exp(l_ij - mx1), axis=1, keepdims=True))
            lse1 = jnp.log(s1) + mx1                           # (K, 1)

            # rows K..2K-1 are [l_ij^T | l_jj_m]  (l_jj_m is symmetric)
            mx2 = jnp.maximum(jnp.max(l_ij, axis=0, keepdims=True),
                              jnp.max(l_jj_m, axis=0, keepdims=True))
            s2 = (jnp.sum(jnp.exp(l_ij - mx2), axis=0, keepdims=True)
                  + jnp.sum(jnp.exp(l_jj_m - mx2), axis=0, keepdims=True))
            lse2 = jnp.log(s2) + mx2                           # (1, K)

            # positive logits (multiplier=2): label(i) = (i + K) mod 2K, so each
            # positive is a diagonal element of l_ij, counted once per half.
            pos = jnp.sum(jnp.where(eye, l_ij, 0.0))

            n = jnp.float32(2 * K)
            loss = -(2.0 * pos - jnp.sum(lse1) - jnp.sum(lse2)) / n
            out_ref[0] = loss + en_loss

    return kernel


def cluster_loss(c_i, c_j, tau=1.0, multiplier=2, block_b=None,
                 mxu_dtype=jnp.bfloat16):
    """Pallas TPU ClusterLoss forward. Returns a scalar f32 loss.

    mxu_dtype=bfloat16 (default) streams bf16 from HBM and uses bf16 MXU
    operands with f32 accumulation (v6e/v7x MXU-native); pass float32 for a
    bit-accurate validation path.
    """
    assert c_i.ndim == 2 and c_i.shape == c_j.shape and c_i.dtype == c_j.dtype
    # TODO(synk): multiplier > 2 needs (m-1) positives per row; only m=2 here.
    assert multiplier == 2, "only multiplier=2 is supported"
    B, K = c_i.shape

    # --- stream the narrowest useful dtype from HBM (halves bytes for bf16) ---
    # In a real pipeline the producer should emit bf16 directly; the cast here
    # stands in for that when the caller hands us f32.
    if jnp.dtype(mxu_dtype).itemsize < jnp.dtype(c_i.dtype).itemsize:
        c_i = c_i.astype(mxu_dtype)
        c_j = c_j.astype(mxu_dtype)
    itemsize = jnp.dtype(c_i.dtype).itemsize

    fuse_gram = (K % 128 == 0)        # lane-aligned concat -> one wide MXU pass

    # --- VMEM accounting: scratch is single-buffered, inputs double-buffered --
    k_sub = _round_up(max(K, 8), 8)
    k_lane = _round_up(K, 128)
    if fuse_gram:
        gram_bytes = (k_sub * _round_up(2 * K, 128) + k_sub * k_lane) * 4
    else:
        gram_bytes = 3 * k_sub * k_lane * 4
    colsum_bytes = 4 * 8 * k_lane * 4
    # Finalize temporaries (l_ii/l_ij/l_jj, eye, exp terms) are values that may
    # live in VMEM on the last step; reserve room so they never collide with
    # the pipelined input windows.
    finalize_bytes = 6 * k_sub * k_lane * 4
    scratch_bytes = gram_bytes + colsum_bytes + finalize_bytes
    # TODO(synk): for K large enough that the (K,K) f32 scratch + finalize
    # temporaries overflow v7x's 64 MiB VMEM (K >~ 1200), emit the Gram /
    # column-sum partials as kernel outputs and run the O(K^2) finalize in
    # plain JAX (or row-tile the finalize) instead of holding it all resident.

    try:
        vmem_cap = int(getattr(pltpu.get_tpu_info(), "vmem_capacity_bytes",
                               64 * 1024 * 1024))
    except Exception:   # conservative, v7x-safe fallback if the query fails
        vmem_cap = 64 * 1024 * 1024
    usable = vmem_cap - (16 << 20)            # headroom for compiler scratch

    row_align = 16 if (itemsize < 4 and B >= 16) else 8   # bf16 sublane packing
    per_row = 2 * 2 * k_lane * itemsize       # 2 inputs x 2 pipeline buffers

    if block_b is None:
        budget = max(usable - scratch_bytes, 4 << 20)
        block_b = min(4096, max(row_align, budget // per_row))
    block_b = max(8, (int(block_b) // row_align) * row_align)

    # Never let the block exceed the array; the ragged tail is masked in-kernel
    # (no wrapper-side jnp.pad, i.e. no extra HBM round trip of the inputs).
    if B >= 8:
        cap = (B // row_align) * row_align
        if cap < 8:
            cap = (B // 8) * 8
        block_b = min(block_b, cap)
    else:
        block_b = B          # block == full (sub-8) sublane dim is always legal
    num_tiles = -(-B // block_b)

    in_window_bytes = 2 * 2 * block_b * k_lane * itemsize
    vmem_limit = int(min(max(in_window_bytes + scratch_bytes + (4 << 20),
                             32 << 20),
                         vmem_cap - (8 << 20)))

    if fuse_gram:
        gram_scratch = [pltpu.VMEM((K, 2 * K), jnp.float32),   # [G_ii | G_ij]
                        pltpu.VMEM((K, K), jnp.float32)]       # G_jj
    else:
        gram_scratch = [pltpu.VMEM((K, K), jnp.float32),       # G_ii
                        pltpu.VMEM((K, K), jnp.float32),       # G_ij
                        pltpu.VMEM((K, K), jnp.float32)]       # G_jj

    kernel = _make_cluster_loss_kernel(tau, K, num_tiles, block_b, B,
                                       mxu_dtype, fuse_gram)
    # TODO(synk): v7x has 2 TensorCores — split the B accumulation across them
    # (leading size-2 "parallel" grid axis with per-core Gram/col-sum partials
    # emitted as outputs, combined in a tiny follow-up step) for ~2x on large B.
    out = pl.pallas_call(
        kernel,
        out_shape=jax.ShapeDtypeStruct((1,), jnp.float32),
        grid_spec=pltpu.PrefetchScalarGridSpec(
            num_scalar_prefetch=0,
            grid=(num_tiles,),
            in_specs=[
                pl.BlockSpec((block_b, K), lambda b: (b, 0)),
                pl.BlockSpec((block_b, K), lambda b: (b, 0)),
            ],
            out_specs=pl.BlockSpec(memory_space=pltpu.MemorySpace.SMEM),
            scratch_shapes=gram_scratch + [
                pltpu.VMEM((1, K), jnp.float32),   # column sums of c_i
                pltpu.VMEM((1, K), jnp.float32),   # column sums of c_j
                pltpu.VMEM((1, K), jnp.float32),   # column sums of c_i^2
                pltpu.VMEM((1, K), jnp.float32),   # column sums of c_j^2
            ],
        ),
        compiler_params=pltpu.CompilerParams(
            dimension_semantics=("arbitrary",),
            vmem_limit_bytes=vmem_limit,
        ),
    )(c_i, c_j)
    return out[0]


def cluster_loss_ref(c_i, c_j, tau=1.0, multiplier=2):
    """Pure-JAX reference mirroring the PyTorch forward (for validation)."""
    K = c_i.shape[1]
    p_i = jnp.sum(c_i, axis=0)
    p_i = p_i / jnp.sum(p_i)
    en_i = jnp.log(jnp.float32(K)) + jnp.sum(p_i * jnp.log(p_i))
    p_j = jnp.sum(c_j, axis=0)
    p_j = p_j / jnp.sum(p_j)
    en_j = jnp.log(jnp.float32(K)) + jnp.sum(p_j * jnp.log(p_j))
    en_loss = en_i + en_j

    c = jnp.concatenate([c_i.T, c_j.T], axis=0)
    n = c.shape[0]
    c = c / jnp.maximum(jnp.linalg.norm(c, axis=1, keepdims=True), 1e-12)
    c = c / np.sqrt(tau)
    logits = c @ c.T
    logits = logits.at[jnp.arange(n), jnp.arange(n)].set(-LARGE_NUMBER)
    logprob = jax.nn.log_softmax(logits, axis=1)
    m = multiplier
    labels = (np.repeat(np.arange(n), m) + np.tile(np.arange(m) * n // m, n)) % n
    labels = labels.reshape(n, m)[:, 1:].reshape(-1)
    loss = -jnp.sum(logprob[np.repeat(np.arange(n), m - 1), labels]) / n / (m - 1)
    return loss + en_loss


if __name__ == "__main__":
    key = jax.random.PRNGKey(0)
    k1, k2, k3, k4, k5, k6 = jax.random.split(key, 6)

    # Case 1: tiny demo shape (batch=8, clusters=16 -> n=32), exact f32 path.
    B, K = 8, 16
    c_i = jax.nn.softmax(jax.random.normal(k1, (B, K), dtype=jnp.float32), axis=1)
    c_j = jax.nn.softmax(jax.random.normal(k2, (B, K), dtype=jnp.float32), axis=1)
    ref = cluster_loss_ref(c_i, c_j, tau=1.0)
    out = jax.block_until_ready(cluster_loss(c_i, c_j, tau=1.0,
                                             mxu_dtype=jnp.float32))
    np.testing.assert_allclose(np.asarray(out), np.asarray(ref),
                               rtol=1e-4, atol=1e-4)

    # Case 2: B not a multiple of the tile (exercises in-kernel tail masking +
    # multi-tile grid accumulation), K not 128-aligned, different tau.
    B2, K2 = 36, 10
    d_i = jax.nn.softmax(jax.random.normal(k3, (B2, K2), dtype=jnp.float32), axis=1)
    d_j = jax.nn.softmax(jax.random.normal(k4, (B2, K2), dtype=jnp.float32), axis=1)
    out2 = jax.block_until_ready(cluster_loss(d_i, d_j, tau=0.5, block_b=16,
                                              mxu_dtype=jnp.float32))
    ref2 = cluster_loss_ref(d_i, d_j, tau=0.5)
    np.testing.assert_allclose(np.asarray(out2), np.asarray(ref2),
                               rtol=1e-4, atol=1e-4)

    # Case 3: default path — bf16 streaming + bf16 MXU operands with f32
    # accumulation; looser tolerance covers bf16 input/operand rounding.
    out3 = jax.block_until_ready(cluster_loss(c_i, c_j, tau=1.0))
    np.testing.assert_allclose(np.asarray(out3), np.asarray(ref),
                               rtol=3e-2, atol=3e-2)

    # Case 4: K % 128 == 0 -> fused [G_ii | G_ij] MXU pass, ragged multi-tile
    # batch, default bf16 streaming.  Reference is fed the same bf16-rounded
    # inputs so only in-kernel (f32-accumulated) rounding differences remain.
    B4, K4 = 300, 128
    e_i = jax.nn.softmax(jax.random.normal(k5, (B4, K4), dtype=jnp.float32), axis=1)
    e_j = jax.nn.softmax(jax.random.normal(k6, (B4, K4), dtype=jnp.float32), axis=1)
    out4 = jax.block_until_ready(cluster_loss(e_i, e_j, tau=1.0))
    ref4 = cluster_loss_ref(e_i.astype(jnp.bfloat16).astype(jnp.float32),
                            e_j.astype(jnp.bfloat16).astype(jnp.float32), tau=1.0)
    np.testing.assert_allclose(np.asarray(out4), np.asarray(ref4),
                               rtol=5e-3, atol=5e-3)

    print("KERNEL_OK")
</pallas_src>

<mosaic_0001>
module attributes {stable_mosaic.version = 11 : i64} {
  func.func @kernel(%arg0: i32, %arg1: memref<8x16xf32, #tpu.memory_space<vmem>>, %arg2: memref<8x16xf32, #tpu.memory_space<vmem>>, %arg3: memref<1xf32, #tpu.memory_space<smem>>, %arg4: memref<16x16xf32, #tpu.memory_space<vmem>>, %arg5: memref<16x16xf32, #tpu.memory_space<vmem>>, %arg6: memref<16x16xf32, #tpu.memory_space<vmem>>, %arg7: memref<1x16xf32, #tpu.memory_space<vmem>>, %arg8: memref<1x16xf32, #tpu.memory_space<vmem>>, %arg9: memref<1x16xf32, #tpu.memory_space<vmem>>, %arg10: memref<1x16xf32, #tpu.memory_space<vmem>>) attributes {dimension_semantics = [#tpu.dimension_semantics<arbitrary>], iteration_bounds = array<i64: 1>, scalar_prefetch = 0 : i64, scratch_operands = 7 : i64, tpu.core_type = #tpu.core_type<tc>, window_params = [{transform_indices = @transform_0, window_bounds = array<i64: 8, 16>}, {transform_indices = @transform_1, window_bounds = array<i64: 8, 16>}, {transform_indices = @transform_2, window_bounds = array<i64: 1>}]} {
    %c0_i32 = arith.constant 0 : i32
    %0 = arith.cmpi eq, %arg0, %c0_i32 : i32
    %1 = arith.extui %0 : i1 to i32
    %c0_i32_0 = arith.constant 0 : i32
    %2 = arith.cmpi ne, %1, %c0_i32_0 : i32
    scf.if %2 {
      %cst_40 = arith.constant 0.000000e+00 : f32
      %42 = vector.broadcast %cst_40 : f32 to vector<16x16xf32>
      %c0_41 = arith.constant 0 : index
      %c0_42 = arith.constant 0 : index
      %43 = vector.load %arg4[%c0_41, %c0_42] : memref<16x16xf32, #tpu.memory_space<vmem>>, vector<16x16xf32>
      tpu.vector_store %arg4[%c0_41, %c0_42], %42 {strides = array<i32>} : memref<16x16xf32, #tpu.memory_space<vmem>>, vector<16x16xf32>,
      %cst_43 = arith.constant 0.000000e+00 : f32
      %44 = vector.broadcast %cst_43 : f32 to vector<16x16xf32>
      %c0_44 = arith.constant 0 : index
      %c0_45 = arith.constant 0 : index
      %45 = vector.load %arg5[%c0_44, %c0_45] : memref<16x16xf32, #tpu.memory_space<vmem>>, vector<16x16xf32>
      tpu.vector_store %arg5[%c0_44, %c0_45], %44 {strides = array<i32>} : memref<16x16xf32, #tpu.memory_space<vmem>>, vector<16x16xf32>,
      %cst_46 = arith.constant 0.000000e+00 : f32
      %46 = vector.broadcast %cst_46 : f32 to vector<16x16xf32>
      %c0_47 = arith.constant 0 : index
      %c0_48 = arith.constant 0 : index
      %47 = vector.load %arg6[%c0_47, %c0_48] : memref<16x16xf32, #tpu.memory_space<vmem>>, vector<16x16xf32>
      tpu.vector_store %arg6[%c0_47, %c0_48], %46 {strides = array<i32>} : memref<16x16xf32, #tpu.memory_space<vmem>>, vector<16x16xf32>,
      %cst_49 = arith.constant 0.000000e+00 : f32
      %48 = vector.broadcast %cst_49 : f32 to vector<1x16xf32>
      %c0_50 = arith.constant 0 : index
      %c0_51 = arith.constant 0 : index
      %49 = vector.load %arg7[%c0_50, %c0_51] : memref<1x16xf32, #tpu.memory_space<vmem>>, vector<1x16xf32>
      tpu.vector_store %arg7[%c0_50, %c0_51], %48 {strides = array<i32>} : memref<1x16xf32, #tpu.memory_space<vmem>>, vector<1x16xf32>,
      %cst_52 = arith.constant 0.000000e+00 : f32
      %50 = vector.broadcast %cst_52 : f32 to vector<1x16xf32>
      %c0_53 = arith.constant 0 : index
      %c0_54 = arith.constant 0 : index
      %51 = vector.load %arg8[%c0_53, %c0_54] : memref<1x16xf32, #tpu.memory_space<vmem>>, vector<1x16xf32>
      tpu.vector_store %arg8[%c0_53, %c0_54], %50 {strides = array<i32>} : memref<1x16xf32, #tpu.memory_space<vmem>>, vector<1x16xf32>,
      %cst_55 = arith.constant 0.000000e+00 : f32
      %52 = vector.broadcast %cst_55 : f32 to vector<1x16xf32>
      %c0_56 = arith.constant 0 : index
      %c0_57 = arith.constant 0 : index
      %53 = vector.load %arg9[%c0_56, %c0_57] : memref<1x16xf32, #tpu.memory_space<vmem>>, vector<1x16xf32>
      tpu.vector_store %arg9[%c0_56, %c0_57], %52 {strides = array<i32>} : memref<1x16xf32, #tpu.memory_space<vmem>>, vector<1x16xf32>,
      %cst_58 = arith.constant 0.000000e+00 : f32
      %54 = vector.broadcast %cst_58 : f32 to vector<1x16xf32>
      %c0_59 = arith.constant 0 : index
      %c0_60 = arith.constant 0 : index
      %55 = vector.load %arg10[%c0_59, %c0_60] : memref<1x16xf32, #tpu.memory_space<vmem>>, vector<1x16xf32>
      tpu.vector_store %arg10[%c0_59, %c0_60], %54 {strides = array<i32>} : memref<1x16xf32, #tpu.memory_space<vmem>>, vector<1x16xf32>,
    } else {
    }
    %c0 = arith.constant 0 : index
    %c0_1 = arith.constant 0 : index
    %3 = vector.load %arg1[%c0, %c0_1] : memref<8x16xf32, #tpu.memory_space<vmem>>, vector<8x16xf32>
    %c0_2 = arith.constant 0 : index
    %c0_3 = arith.constant 0 : index
    %4 = vector.load %arg2[%c0_2, %c0_3] : memref<8x16xf32, #tpu.memory_space<vmem>>, vector<8x16xf32>
    %c0_4 = arith.constant 0 : index
    %c0_5 = arith.constant 0 : index
    %5 = vector.load %arg7[%c0_4, %c0_5] : memref<1x16xf32, #tpu.memory_space<vmem>>, vector<1x16xf32>
    %cst = arith.constant dense<0.000000e+00> : vector<16xf32>
    %6 = vector.multi_reduction <add>, %3, %cst [0] : vector<8x16xf32> to vector<16xf32>
    %7 = vector.shape_cast %6 : vector<16xf32> to vector<1x16xf32>
    %8 = arith.addf %5, %7 : vector<1x16xf32>
    %c0_6 = arith.constant 0 : index
    %c0_7 = arith.constant 0 : index
    %9 = vector.load %arg7[%c0_6, %c0_7] : memref<1x16xf32, #tpu.memory_space<vmem>>, vector<1x16xf32>
    tpu.vector_store %arg7[%c0_6, %c0_7], %8 {strides = array<i32>} : memref<1x16xf32, #tpu.memory_space<vmem>>, vector<1x16xf32>,
    %c0_8 = arith.constant 0 : index
    %c0_9 = arith.constant 0 : index
    %10 = vector.load %arg8[%c0_8, %c0_9] : memref<1x16xf32, #tpu.memory_space<vmem>>, vector<1x16xf32>
    %cst_10 = arith.constant dense<0.000000e+00> : vector<16xf32>
    %11 = vector.multi_reduction <add>, %4, %cst_10 [0] : vector<8x16xf32> to vector<16xf32>
    %12 = vector.shape_cast %11 : vector<16xf32> to vector<1x16xf32>
    %13 = arith.addf %10, %12 : vector<1x16xf32>
    %c0_11 = arith.constant 0 : index
    %c0_12 = arith.constant 0 : index
    %14 = vector.load %arg8[%c0_11, %c0_12] : memref<1x16xf32, #tpu.memory_space<vmem>>, vector<1x16xf32>
    tpu.vector_store %arg8[%c0_11, %c0_12], %13 {strides = array<i32>} : memref<1x16xf32, #tpu.memory_space<vmem>>, vector<1x16xf32>,
    %c0_13 = arith.constant 0 : index
    %c0_14 = arith.constant 0 : index
    %15 = vector.load %arg9[%c0_13, %c0_14] : memref<1x16xf32, #tpu.memory_space<vmem>>, vector<1x16xf32>
    %16 = arith.mulf %3, %3 : vector<8x16xf32>
    %cst_15 = arith.constant dense<0.000000e+00> : vector<16xf32>
    %17 = vector.multi_reduction <add>, %16, %cst_15 [0] : vector<8x16xf32> to vector<16xf32>
    %18 = vector.shape_cast %17 : vector<16xf32> to vector<1x16xf32>
    %19 = arith.addf %15, %18 : vector<1x16xf32>
    %c0_16 = arith.constant 0 : index
    %c0_17 = arith.constant 0 : index
    %20 = vector.load %arg9[%c0_16, %c0_17] : memref<1x16xf32, #tpu.memory_space<vmem>>, vector<1x16xf32>
    tpu.vector_store %arg9[%c0_16, %c0_17], %19 {strides = array<i32>} : memref<1x16xf32, #tpu.memory_space<vmem>>, vector<1x16xf32>,
    %c0_18 = arith.constant 0 : index
    %c0_19 = arith.constant 0 : index
    %21 = vector.load %arg10[%c0_18, %c0_19] : memref<1x16xf32, #tpu.memory_space<vmem>>, vector<1x16xf32>
    %22 = arith.mulf %4, %4 : vector<8x16xf32>
    %cst_20 = arith.constant dense<0.000000e+00> : vector<16xf32>
    %23 = vector.multi_reduction <add>, %22, %cst_20 [0] : vector<8x16xf32> to vector<16xf32>
    %24 = vector.shape_cast %23 : vector<16xf32> to vector<1x16xf32>
    %25 = arith.addf %21, %24 : vector<1x16xf32>
    %c0_21 = arith.constant 0 : index
    %c0_22 = arith.constant 0 : index
    %26 = vector.load %arg10[%c0_21, %c0_22] : memref<1x16xf32, #tpu.memory_space<vmem>>, vector<1x16xf32>
    tpu.vector_store %arg10[%c0_21, %c0_22], %25 {strides = array<i32>} : memref<1x16xf32, #tpu.memory_space<vmem>>, vector<1x16xf32>,
    %c0_23 = arith.constant 0 : index
    %c0_24 = arith.constant 0 : index
    %27 = vector.load %arg4[%c0_23, %c0_24] : memref<16x16xf32, #tpu.memory_space<vmem>>, vector<16x16xf32>
    %cst_25 = arith.constant dense<0.000000e+00> : vector<16x16xf32>
    %28 = tpu.matmul %3, %3, %cst_25 {dimension_numbers = #tpu.dot_dimension_numbers<[0], [0], [1], [1], [0, 1, 1, 1], [], []>} : vector<8x16xf32>, vector<8x16xf32>, vector<16x16xf32> -> vector<16x16xf32>
    %29 = arith.addf %27, %28 : vector<16x16xf32>
    %c0_26 = arith.constant 0 : index
    %c0_27 = arith.constant 0 : index
    %30 = vector.load %arg4[%c0_26, %c0_27] : memref<16x16xf32, #tpu.memory_space<vmem>>, vector<16x16xf32>
    tpu.vector_store %arg4[%c0_26, %c0_27], %29 {strides = array<i32>} : memref<16x16xf32, #tpu.memory_space<vmem>>, vector<16x16xf32>,
    %c0_28 = arith.constant 0 : index
    %c0_29 = arith.constant 0 : index
    %31 = vector.load %arg5[%c0_28, %c0_29] : memref<16x16xf32, #tpu.memory_space<vmem>>, vector<16x16xf32>
    %cst_30 = arith.constant dense<0.000000e+00> : vector<16x16xf32>
    %32 = tpu.matmul %3, %4, %cst_30 {dimension_numbers = #tpu.dot_dimension_numbers<[0], [0], [1], [1], [0, 1, 1, 1], [], []>} : vector<8x16xf32>, vector<8x16xf32>, vector<16x16xf32> -> vector<16x16xf32>
    %33 = arith.addf %31, %32 : vector<16x16xf32>
    %c0_31 = arith.constant 0 : index
    %c0_32 = arith.constant 0 : index
    %34 = vector.load %arg5[%c0_31, %c0_32] : memref<16x16xf32, #tpu.memory_space<vmem>>, vector<16x16xf32>
    tpu.vector_store %arg5[%c0_31, %c0_32], %33 {strides = array<i32>} : memref<16x16xf32, #tpu.memory_space<vmem>>, vector<16x16xf32>,
    %c0_33 = arith.constant 0 : index
    %c0_34 = arith.constant 0 : index
    %35 = vector.load %arg6[%c0_33, %c0_34] : memref<16x16xf32, #tpu.memory_space<vmem>>, vector<16x16xf32>
    %cst_35 = arith.constant dense<0.000000e+00> : vector<16x16xf32>
    %36 = tpu.matmul %4, %4, %cst_35 {dimension_numbers = #tpu.dot_dimension_numbers<[0], [0], [1], [1], [0, 1, 1, 1], [], []>} : vector<8x16xf32>, vector<8x16xf32>, vector<16x16xf32> -> vector<16x16xf32>
    %37 = arith.addf %35, %36 : vector<16x16xf32>
    %c0_36 = arith.constant 0 : index
    %c0_37 = arith.constant 0 : index
    %38 = vector.load %arg6[%c0_36, %c0_37] : memref<16x16xf32, #tpu.memory_space<vmem>>, vector<16x16xf32>
    tpu.vector_store %arg6[%c0_36, %c0_37], %37 {strides = array<i32>} : memref<16x16xf32, #tpu.memory_space<vmem>>, vector<16x16xf32>,
    %c0_i32_38 = arith.constant 0 : i32
    %39 = arith.cmpi eq, %arg0, %c0_i32_38 : i32
    %40 = arith.extui %39 : i1 to i32
    %c0_i32_39 = arith.constant 0 : i32
    %41 = arith.cmpi ne, %40, %c0_i32_39 : i32
    scf.if %41 {
      %c0_40 = arith.constant 0 : index
      %c0_41 = arith.constant 0 : index
      %42 = vector.load %arg4[%c0_40, %c0_41] : memref<16x16xf32, #tpu.memory_space<vmem>>, vector<16x16xf32>
      %c0_42 = arith.constant 0 : index
      %c0_43 = arith.constant 0 : index
      %43 = vector.load %arg5[%c0_42, %c0_43] : memref<16x16xf32, #tpu.memory_space<vmem>>, vector<16x16xf32>
      %c0_44 = arith.constant 0 : index
      %c0_45 = arith.constant 0 : index
      %44 = vector.load %arg6[%c0_44, %c0_45] : memref<16x16xf32, #tpu.memory_space<vmem>>, vector<16x16xf32>
      %c0_46 = arith.constant 0 : index
      %c0_47 = arith.constant 0 : index
      %45 = vector.load %arg7[%c0_46, %c0_47] : memref<1x16xf32, #tpu.memory_space<vmem>>, vector<1x16xf32>
      %46 = vector.shape_cast %45 : vector<1x16xf32> to vector<1x1x16xf32>
      %cst_48 = arith.constant dense<0.000000e+00> : vector<1xf32>
      %47 = vector.multi_reduction <add>, %46, %cst_48 [1, 2] : vector<1x1x16xf32> to vector<1xf32>
      %48 = vector.shape_cast %47 : vector<1xf32> to vector<1x1x1xf32>
      %49 = vector.extract %48[0, 0, 0] : f32 from vector<1x1x1xf32>
      %50 = vector.broadcast %49 : f32 to vector<1x16xf32>
      %51 = arith.divf %45, %50 : vector<1x16xf32>
      %cst_49 = arith.constant 1.000000e-30 : f32
      %52 = vector.broadcast %cst_49 : f32 to vector<1x16xf32>
      %53 = arith.maximumf %51, %52 : vector<1x16xf32>
      %54 = math.log %53 : vector<1x16xf32>
      %55 = arith.mulf %51, %54 : vector<1x16xf32>
      %56 = vector.shape_cast %55 : vector<1x16xf32> to vector<1x1x16xf32>
      %cst_50 = arith.constant dense<0.000000e+00> : vector<1xf32>
      %57 = vector.multi_reduction <add>, %56, %cst_50 [1, 2] : vector<1x1x16xf32> to vector<1xf32>
      %58 = vector.shape_cast %57 : vector<1xf32> to vector<1x1x1xf32>
      %59 = vector.extract %58[0, 0, 0] : f32 from vector<1x1x1xf32>
      %cst_51 = arith.constant 2.77258873 : f32
      %60 = arith.addf %cst_51, %59 : f32
      %c0_52 = arith.constant 0 : index
      %c0_53 = arith.constant 0 : index
      %61 = vector.load %arg8[%c0_52, %c0_53] : memref<1x16xf32, #tpu.memory_space<vmem>>, vector<1x16xf32>
      %62 = vector.shape_cast %61 : vector<1x16xf32> to vector<1x1x16xf32>
      %cst_54 = arith.constant dense<0.000000e+00> : vector<1xf32>
      %63 = vector.multi_reduction <add>, %62, %cst_54 [1, 2] : vector<1x1x16xf32> to vector<1xf32>
      %64 = vector.shape_cast %63 : vector<1xf32> to vector<1x1x1xf32>
      %65 = vector.extract %64[0, 0, 0] : f32 from vector<1x1x1xf32>
      %66 = vector.broadcast %65 : f32 to vector<1x16xf32>
      %67 = arith.divf %61, %66 : vector<1x16xf32>
      %cst_55 = arith.constant 1.000000e-30 : f32
      %68 = vector.broadcast %cst_55 : f32 to vector<1x16xf32>
      %69 = arith.maximumf %67, %68 : vector<1x16xf32>
      %70 = math.log %69 : vector<1x16xf32>
      %71 = arith.mulf %67, %70 : vector<1x16xf32>
      %72 = vector.shape_cast %71 : vector<1x16xf32> to vector<1x1x16xf32>
      %cst_56 = arith.constant dense<0.000000e+00> : vector<1xf32>
      %73 = vector.multi_reduction <add>, %72, %cst_56 [1, 2] : vector<1x1x16xf32> to vector<1xf32>
      %74 = vector.shape_cast %73 : vector<1xf32> to vector<1x1x1xf32>
      %75 = vector.extract %74[0, 0, 0] : f32 from vector<1x1x1xf32>
      %cst_57 = arith.constant 2.77258873 : f32
      %76 = arith.addf %cst_57, %75 : f32
      %77 = arith.addf %60, %76 : f32
      %78 = tpu.iota {dimensions = array<i32: 0>} : vector<16x16xi32>
      %79 = tpu.iota {dimensions = array<i32: 1>} : vector<16x16xi32>
      %80 = arith.cmpi eq, %78, %79 : vector<16x16xi32>
      %cst_58 = arith.constant 0.000000e+00 : f32
      %81 = vector.broadcast %cst_58 : f32 to vector<16x16xf32>
      %82 = arith.select %80, %42, %81 : vector<16x16xi1>, vector<16x16xf32>
      %cst_59 = arith.constant dense<0.000000e+00> : vector<16xf32>
      %83 = vector.multi_reduction <add>, %82, %cst_59 [1] : vector<16x16xf32> to vector<16xf32>
      %84 = vector.shape_cast %83 : vector<16xf32> to vector<16x1xf32>
      %cst_60 = arith.constant 0.000000e+00 : f32
      %85 = vector.broadcast %cst_60 : f32 to vector<16x16xf32>
      %86 = arith.select %80, %44, %85 : vector<16x16xi1>, vector<16x16xf32>
      %cst_61 = arith.constant dense<0.000000e+00> : vector<16xf32>
      %87 = vector.multi_reduction <add>, %86, %cst_61 [1] : vector<16x16xf32> to vector<16xf32>
      %88 = vector.shape_cast %87 : vector<16xf32> to vector<16x1xf32>
      %89 = math.sqrt %84 : vector<16x1xf32>
      %cst_62 = arith.constant 9.99999996E-13 : f32
      %90 = vector.broadcast %cst_62 : f32 to vector<16x1xf32>
      %91 = arith.maximumf %89, %90 : vector<16x1xf32>
      %cst_63 = arith.constant 1.000000e+00 : f32
      %92 = vector.broadcast %cst_63 : f32 to vector<16x1xf32>
      %93 = arith.divf %92, %91 : vector<16x1xf32>
      %94 = math.sqrt %88 : vector<16x1xf32>
      %cst_64 = arith.constant 9.99999996E-13 : f32
      %95 = vector.broadcast %cst_64 : f32 to vector<16x1xf32>
      %96 = arith.maximumf %94, %95 : vector<16x1xf32>
      %cst_65 = arith.constant 1.000000e+00 : f32
      %97 = vector.broadcast %cst_65 : f32 to vector<16x1xf32>
      %98 = arith.divf %97, %96 : vector<16x1xf32>
      %c0_66 = arith.constant 0 : index
      %c0_67 = arith.constant 0 : index
      %99 = vector.load %arg9[%c0_66, %c0_67] : memref<1x16xf32, #tpu.memory_space<vmem>>, vector<1x16xf32>
      %100 = math.sqrt %99 : vector<1x16xf32>
      %cst_68 = arith.constant 9.99999996E-13 : f32
      %101 = vector.broadcast %cst_68 : f32 to vector<1x16xf32>
      %102 = arith.maximumf %100, %101 : vector<1x16xf32>
      %cst_69 = arith.constant 1.000000e+00 : f32
      %103 = vector.broadcast %cst_69 : f32 to vector<1x16xf32>
      %104 = arith.divf %103, %102 : vector<1x16xf32>
      %c0_70 = arith.constant 0 : index
      %c0_71 = arith.constant 0 : index
      %105 = vector.load %arg10[%c0_70, %c0_71] : memref<1x16xf32, #tpu.memory_space<vmem>>, vector<1x16xf32>
      %106 = math.sqrt %105 : vector<1x16xf32>
      %cst_72 = arith.constant 9.99999996E-13 : f32
      %107 = vector.broadcast %cst_72 : f32 to vector<1x16xf32>
      %108 = arith.maximumf %106, %107 : vector<1x16xf32>
      %cst_73 = arith.constant 1.000000e+00 : f32
      %109 = vector.broadcast %cst_73 : f32 to vector<1x16xf32>
      %110 = arith.divf %109, %108 : vector<1x16xf32>
      %111 = vector.broadcast %93 : vector<16x1xf32> to vector<16x16xf32>
      %112 = vector.broadcast %104 : vector<1x16xf32> to vector<16x16xf32>
      %113 = arith.mulf %111, %112 : vector<16x16xf32>
      %114 = arith.mulf %42, %113 : vector<16x16xf32>
      %115 = vector.broadcast %93 : vector<16x1xf32> to vector<16x16xf32>
      %116 = vector.broadcast %110 : vector<1x16xf32> to vector<16x16xf32>
      %117 = arith.mulf %115, %116 : vector<16x16xf32>
      %118 = arith.mulf %43, %117 : vector<16x16xf32>
      %119 = vector.broadcast %98 : vector<16x1xf32> to vector<16x16xf32>
      %120 = vector.broadcast %110 : vector<1x16xf32> to vector<16x16xf32>
      %121 = arith.mulf %119, %120 : vector<16x16xf32>
      %122 = arith.mulf %44, %121 : vector<16x16xf32>
      %cst_74 = arith.constant -1.000000e+04 : f32
      %123 = vector.broadcast %cst_74 : f32 to vector<16x16xf32>
      %124 = arith.select %80, %123, %114 : vector<16x16xi1>, vector<16x16xf32>
      %cst_75 = arith.constant -1.000000e+04 : f32
      %125 = vector.broadcast %cst_75 : f32 to vector<16x16xf32>
      %126 = arith.select %80, %125, %122 : vector<16x16xi1>, vector<16x16xf32>
      %cst_76 = arith.constant dense<0xFF800000> : vector<16xf32>
      %127 = vector.multi_reduction <maximumf>, %124, %cst_76 [1] : vector<16x16xf32> to vector<16xf32>
      %128 = vector.shape_cast %127 : vector<16xf32> to vector<16x1xf32>
      %cst_77 = arith.constant dense<0xFF800000> : vector<16xf32>
      %129 = vector.multi_reduction <maximumf>, %118, %cst_77 [1] : vector<16x16xf32> to vector<16xf32>
      %130 = vector.shape_cast %129 : vector<16xf32> to vector<16x1xf32>
      %131 = arith.maximumf %128, %130 : vector<16x1xf32>
      %132 = vector.broadcast %131 : vector<16x1xf32> to vector<16x16xf32>
      %133 = arith.subf %124, %132 : vector<16x16xf32>
      %134 = math.exp %133 : vector<16x16xf32>
      %cst_78 = arith.constant dense<0.000000e+00> : vector<16xf32>
      %135 = vector.multi_reduction <add>, %134, %cst_78 [1] : vector<16x16xf32> to vector<16xf32>
      %136 = vector.shape_cast %135 : vector<16xf32> to vector<16x1xf32>
      %137 = vector.broadcast %131 : vector<16x1xf32> to vector<16x16xf32>
      %138 = arith.subf %118, %137 : vector<16x16xf32>
      %139 = math.exp %138 : vector<16x16xf32>
      %cst_79 = arith.constant dense<0.000000e+00> : vector<16xf32>
      %140 = vector.multi_reduction <add>, %139, %cst_79 [1] : vector<16x16xf32> to vector<16xf32>
      %141 = vector.shape_cast %140 : vector<16xf32> to vector<16x1xf32>
      %142 = arith.addf %136, %141 : vector<16x1xf32>
      %143 = math.log %142 : vector<16x1xf32>
      %144 = arith.addf %143, %131 : vector<16x1xf32>
      %cst_80 = arith.constant dense<0xFF800000> : vector<16xf32>
      %145 = vector.multi_reduction <maximumf>, %118, %cst_80 [0] : vector<16x16xf32> to vector<16xf32>
      %146 = vector.shape_cast %145 : vector<16xf32> to vector<1x16xf32>
      %cst_81 = arith.constant dense<0xFF800000> : vector<16xf32>
      %147 = vector.multi_reduction <maximumf>, %126, %cst_81 [0] : vector<16x16xf32> to vector<16xf32>
      %148 = vector.shape_cast %147 : vector<16xf32> to vector<1x16xf32>
      %149 = arith.maximumf %146, %148 : vector<1x16xf32>
      %150 = vector.broadcast %149 : vector<1x16xf32> to vector<16x16xf32>
      %151 = arith.subf %118, %150 : vector<16x16xf32>
      %152 = math.exp %151 : vector<16x16xf32>
      %cst_82 = arith.constant dense<0.000000e+00> : vector<16xf32>
      %153 = vector.multi_reduction <add>, %152, %cst_82 [0] : vector<16x16xf32> to vector<16xf32>
      %154 = vector.shape_cast %153 : vector<16xf32> to vector<1x16xf32>
      %155 = vector.broadcast %149 : vector<1x16xf32> to vector<16x16xf32>
      %156 = arith.subf %126, %155 : vector<16x16xf32>
      %157 = math.exp %156 : vector<16x16xf32>
      %cst_83 = arith.constant dense<0.000000e+00> : vector<16xf32>
      %158 = vector.multi_reduction <add>, %157, %cst_83 [0] : vector<16x16xf32> to vector<16xf32>
      %159 = vector.shape_cast %158 : vector<16xf32> to vector<1x16xf32>
      %160 = arith.addf %154, %159 : vector<1x16xf32>
      %161 = math.log %160 : vector<1x16xf32>
      %162 = arith.addf %161, %149 : vector<1x16xf32>
      %cst_84 = arith.constant 0.000000e+00 : f32
      %163 = vector.broadcast %cst_84 : f32 to vector<16x16xf32>
      %164 = arith.select %80, %118, %163 : vector<16x16xi1>, vector<16x16xf32>
      %165 = vector.shape_cast %164 : vector<16x16xf32> to vector<1x16x16xf32>
      %cst_85 = arith.constant dense<0.000000e+00> : vector<1xf32>
      %166 = vector.multi_reduction <add>, %165, %cst_85 [1, 2] : vector<1x16x16xf32> to vector<1xf32>
      %167 = vector.shape_cast %166 : vector<1xf32> to vector<1x1x1xf32>
      %168 = vector.extract %167[0, 0, 0] : f32 from vector<1x1x1xf32>
      %cst_86 = arith.constant 2.000000e+00 : f32
      %169 = arith.mulf %cst_86, %168 : f32
      %170 = vector.shape_cast %144 : vector<16x1xf32> to vector<1x16x1xf32>
      %cst_87 = arith.constant dense<0.000000e+00> : vector<1xf32>
      %171 = vector.multi_reduction <add>, %170, %cst_87 [1, 2] : vector<1x16x1xf32> to vector<1xf32>
      %172 = vector.shape_cast %171 : vector<1xf32> to vector<1x1x1xf32>
      %173 = vector.extract %172[0, 0, 0] : f32 from vector<1x1x1xf32>
      %174 = arith.subf %169, %173 : f32
      %175 = vector.shape_cast %162 : vector<1x16xf32> to vector<1x1x16xf32>
      %cst_88 = arith.constant dense<0.000000e+00> : vector<1xf32>
      %176 = vector.multi_reduction <add>, %175, %cst_88 [1, 2] : vector<1x1x16xf32> to vector<1xf32>
      %177 = vector.shape_cast %176 : vector<1xf32> to vector<1x1x1xf32>
      %178 = vector.extract %177[0, 0, 0] : f32 from vector<1x1x1xf32>
      %179 = arith.subf %174, %178 : f32
      %cst_89 = arith.constant 0.000000e+00 : f32
      %180 = arith.subf %cst_89, %179 : f32
      %cst_90 = arith.constant 3.200000e+01 : f32
      %181 = arith.divf %180, %cst_90 : f32
      %182 = arith.addf %181, %77 : f32
      %c0_91 = arith.constant 0 : index
      %183 = memref.load %arg3[%c0_91] : memref<1xf32, #tpu.memory_space<smem>>
      memref.store %182, %arg3[%c0_91] : memref<1xf32, #tpu.memory_space<smem>>
    } else {
    }
    return
  }
  func.func @transform_0(%arg0: i32) -> (i32, i32) {
    %c0_i32 = arith.constant 0 : i32
    %c0_i32_0 = arith.constant 0 : i32
    return %arg0, %c0_i32 : i32, i32
  }
  func.func @transform_1(%arg0: i32) -> (i32, i32) {
    %c0_i32 = arith.constant 0 : i32
    %c0_i32_0 = arith.constant 0 : i32
    return %arg0, %c0_i32 : i32, i32
  }
  func.func @transform_2(%arg0: i32) -> i32 {
    %c0_i32 = arith.constant 0 : i32
    %c0_i32_0 = arith.constant 0 : i32
    return %c0_i32 : i32
  }
}

</mosaic_0001>

<llo_original>
// kernel: tpu_custom_call.1
$region0: #{tpu_custom_call.1}
  #allocation0 [shape = 'u32[]', space=smem, size = 0x4, offset = 0x4, fixed_abs, tag = 'smem constant byte address 0x4 - core index']
  #allocation1 [shape = 'u32[144,128]{1,0:T(1,128)}', space=vmem, size = 0x12000, scoped, tag = 'internal scratch']
  #allocation2 [shape = 'f32[16,16]{1,0:T(8,128)}', space=vmem, size = 0x2000, scoped, tag = 'scratch operand']
  #allocation3 [shape = 'f32[16,16]{1,0:T(8,128)}', space=vmem, size = 0x2000, scoped, tag = 'scratch operand']
  #allocation4 [shape = 'f32[16,16]{1,0:T(8,128)}', space=vmem, size = 0x2000, scoped, tag = 'scratch operand']
  #allocation5 [shape = 'f32[1,16]{1,0:T(1,128)}', space=vmem, size = 0x200, scoped, tag = 'scratch operand']
  #allocation6 [shape = 'f32[1,16]{1,0:T(1,128)}', space=vmem, size = 0x200, scoped, tag = 'scratch operand']
  #allocation7 [shape = 'f32[1,16]{1,0:T(1,128)}', space=vmem, size = 0x200, scoped, tag = 'scratch operand']
  #allocation8 [shape = 'f32[1,16]{1,0:T(1,128)}', space=vmem, size = 0x200, scoped, tag = 'scratch operand']
  %s0 = inlined_call_operand.hbm [shape: f32[8,16], index: 0, kind: input, shape index: {}]
  %s1 = inlined_call_operand.hbm [shape: f32[8,16], index: 1, kind: input, shape index: {}]
  %s2 = inlined_call_operand.hbm [shape: f32[1], index: 2, kind: output, shape index: {}]
  %s3 = sld [smem:[#allocation0]]
  $region34: #{tpu_custom_call.1} parent=0
    _
  %s5 = ssub.s32 1, %s3
  %s6 = scalar_select 0, %s5, %s3
  $region1: #{tpu_custom_call.1} parent=0
    #allocation9 [shape = 'u8[4096]{0}', space=vmem, size = 0x1000, scoped, tag = 'input window, operand 0, single buffered']
    #allocation10 [shape = 's32[1]{0}', space=sflag, size = 0x4, scoped, tag = 'scoped memory for tpu_custom_call.1']
    #allocation11 [shape = 's32[1]{0}', space=sflag, size = 0x4, scoped, tag = 'scoped memory for tpu_custom_call.1']
    #allocation12 [shape = 'u8[4096]{0}', space=vmem, size = 0x1000, scoped, tag = 'input window, operand 1, single buffered']
    #allocation13 [shape = 's32[1]{0}', space=sflag, size = 0x4, scoped, tag = 'scoped memory for tpu_custom_call.1']
    #allocation14 [shape = 'u8[512]{0}', space=smem, size = 0x200, scoped, tag = 'output window, operand 0, single buffered']
    %7 = vsyncpa [#allocation10], 0
    %8 = vsyncpa [#allocation13], 0
    %9 = vsyncpa [#allocation11], 0
    // Predicated region
    $region2: #{tpu_custom_call.1} parent=1 // pred_check
      _
    $region3: #{tpu_custom_call.1} parent=1 // pred_check_branch
      %11 = sbr.rel (0) target = $region5
    $region4: #{tpu_custom_call.1} parent=1 // pred_region
      %s13 = ssub.s32 128, 128
      %14 = vsyncadd [#allocation10], %s13
      %s16 = sshll.u32 [#allocation9], 4
      %s17 = int_to_ptr.vmem [resolvable:$true] %s16
      %19 = dma.hbm_to_vmem [thread:$0]  %s0, 128, %s17, [#allocation10]
    $region5: #{tpu_custom_call.1} parent=1 // pred_fallthru
      _
    // Predicated region
    $region6: #{tpu_custom_call.1} parent=1 // pred_check
      _
    $region7: #{tpu_custom_call.1} parent=1 // pred_check_branch
      %21 = sbr.rel (0) target = $region9
    $region8: #{tpu_custom_call.1} parent=1 // pred_region
      %s23 = ssub.s32 128, 128
      %24 = vsyncadd [#allocation13], %s23
      %s26 = sshll.u32 [#allocation12], 4
      %s27 = int_to_ptr.vmem [resolvable:$true] %s26
      %29 = dma.hbm_to_vmem [thread:$0]  %s1, 128, %s27, [#allocation13]
    $region9: #{tpu_custom_call.1} parent=1 // pred_fallthru
      _
    // Predicated region
    $region10: #{tpu_custom_call.1} parent=1 // pred_check
      _
    $region11: #{tpu_custom_call.1} parent=1 // pred_check_branch
      %31 = sbr.rel (0) target = $region13
    $region12: #{tpu_custom_call.1} parent=1 // pred_region
      %32 = dma.done [#allocation10], 128
    $region13: #{tpu_custom_call.1} parent=1 // pred_fallthru
      _
    // Predicated region
    $region14: #{tpu_custom_call.1} parent=1 // pred_check
      _
    $region15: #{tpu_custom_call.1} parent=1 // pred_check_branch
      %34 = sbr.rel (0) target = $region17
    $region16: #{tpu_custom_call.1} parent=1 // pred_region
      %35 = dma.done [#allocation13], 128
    $region17: #{tpu_custom_call.1} parent=1 // pred_fallthru
      _
    %p36 = scmp.eq.s32.totalorder 0, 0
    // Predicated region
    $region18: #{tpu_custom_call.1} parent=1 // pred_check
      %p37 = pneg %p36
    $region19: #{tpu_custom_call.1} parent=1 // pred_check_branch
      %39 = sbr.rel (%p37) target = $region21
    $region20: #{tpu_custom_call.1} parent=1 // pred_region
      %vm40 = vcmask 130048
      %41 = vst.msk [vmem:[#allocation2] sm:$0xff] %vm40, 0.0
      %42 = vst.msk [vmem:[#allocation2 + $0x8] sm:$0xff] %vm40, 0.0
      %43 = vst.msk [vmem:[#allocation3] sm:$0xff] %vm40, 0.0
      %44 = vst.msk [vmem:[#allocation3 + $0x8] sm:$0xff] %vm40, 0.0
      %45 = vst.msk [vmem:[#allocation4] sm:$0xff] %vm40, 0.0
      %46 = vst.msk [vmem:[#allocation4 + $0x8] sm:$0xff] %vm40, 0.0
      %vm47 = vcmask 122880
      %48 = vst.msk [vmem:[#allocation5] sm:$0x1] %vm47, 0.0
      %49 = vst.msk [vmem:[#allocation6] sm:$0x1] %vm47, 0.0
      %50 = vst.msk [vmem:[#allocation7] sm:$0x1] %vm47, 0.0
      %51 = vst.msk [vmem:[#allocation8] sm:$0x1] %vm47, 0.0
    $region21: #{tpu_custom_call.1} parent=1 // pred_fallthru
      _
    %v52 = vld [vmem:[#allocation9] sm:$0xff]
    %v53 = vld [vmem:[#allocation12] sm:$0xff]
    %v54 = vld [vmem:[#allocation5] sm:$0x1]
    %vm55 = vcmask 130048
    %v56 = vsel %vm55, %v52, 0.0
    %v57 = vrot.slane %v56, 4
    %v58 = vadd.f32 %v56, %v57
    %v59 = vrot.slane %v58, 2
    %v60 = vadd.f32 %v58, %v59
    %v61 = vrot.slane %v60, 1
    %v62 = vadd.f32 %v60, %v61
    %v63 = vadd.f32 %v54, %v62
    %vm64 = vcmask 122880
    %65 = vst.msk [vmem:[#allocation5] sm:$0x1] %vm64, %v63
    %v66 = vld [vmem:[#allocation6] sm:$0x1]
    %v67 = vsel %vm55, %v53, 0.0
    %v68 = vrot.slane %v67, 4
    %v69 = vadd.f32 %v67, %v68
    %v70 = vrot.slane %v69, 2
    %v71 = vadd.f32 %v69, %v70
    %v72 = vrot.slane %v71, 1
    %v73 = vadd.f32 %v71, %v72
    %v74 = vadd.f32 %v66, %v73
    %75 = vst.msk [vmem:[#allocation6] sm:$0x1] %vm64, %v74
    %v76 = vld [vmem:[#allocation7] sm:$0x1]
    %v77 = vmul.f32 %v52, %v52
    %v78 = vsel %vm55, %v77, 0.0
    %v79 = vrot.slane %v78, 4
    %v80 = vadd.f32 %v78, %v79
    %v81 = vrot.slane %v80, 2
    %v82 = vadd.f32 %v80, %v81
    %v83 = vrot.slane %v82, 1
    %v84 = vadd.f32 %v82, %v83
    %v85 = vadd.f32 %v76, %v84
    %86 = vst.msk [vmem:[#allocation7] sm:$0x1] %vm64, %v85
    %v87 = vld [vmem:[#allocation8] sm:$0x1]
    %v88 = vmul.f32 %v53, %v53
    %v89 = vsel %vm55, %v88, 0.0
    %v90 = vrot.slane %v89, 4
    %v91 = vadd.f32 %v89, %v90
    %v92 = vrot.slane %v91, 2
    %v93 = vadd.f32 %v91, %v92
    %v94 = vrot.slane %v93, 1
    %v95 = vadd.f32 %v93, %v94
    %v96 = vadd.f32 %v87, %v95
    %97 = vst.msk [vmem:[#allocation8] sm:$0x1] %vm64, %v96
    %v98 = vld [vmem:[#allocation2] sm:$0xff]
    %v99 = vld [vmem:[#allocation2 + $0x8] sm:$0xff]
    %100 = vxpose.xlu0.b32.start [1/16] %v52, 128
    %101 = vxpose.xlu0.b32.cont [2/16] 0.0, 128
    %102 = vxpose.xlu0.b32.cont [3/16] 0.0, 128
    %103 = vxpose.xlu0.b32.cont [4/16] 0.0, 128
    %104 = vxpose.xlu0.b32.cont [5/16] 0.0, 128
    %105 = vxpose.xlu0.b32.cont [6/16] 0.0, 128
    %106 = vxpose.xlu0.b32.cont [7/16] 0.0, 128
    %107 = vxpose.xlu0.b32.cont [8/16] 0.0, 128
    %108 = vxpose.xlu0.b32.cont [9/16] 0.0, 128
    %109 = vxpose.xlu0.b32.cont [10/16] 0.0, 128
    %110 = vxpose.xlu0.b32.cont [11/16] 0.0, 128
    %111 = vxpose.xlu0.b32.cont [12/16] 0.0, 128
    %112 = vxpose.xlu0.b32.cont [13/16] 0.0, 128
    %113 = vxpose.xlu0.b32.cont [14/16] 0.0, 128
    %114 = vxpose.xlu0.b32.cont [15/16] 0.0, 128
    %115 = vxpose.xlu0.b32.end [16/16] 0.0, 128
    %v116 = vpop.trf.xlu0
    %v117 = vpop.trf.xlu0
    %v118 = vpop.trf.xlu0
    %v119 = vpop.trf.xlu0
    %v120 = vpop.trf.xlu0
    %v121 = vpop.trf.xlu0
    %v122 = vpop.trf.xlu0
    %v123 = vpop.trf.xlu0
    %v124 = vpop.trf.xlu0
    %v125 = vpop.trf.xlu0
    %v126 = vpop.trf.xlu0
    %v127 = vpop.trf.xlu0
    %v128 = vpop.trf.xlu0
    %v129 = vpop.trf.xlu0
    %v130 = vpop.trf.xlu0
    %v131 = vpop.trf.xlu0
    %vm132 = vcmask 64512
    %v134 = vsel %vm132, %v116, 0
    %v137 = vsel %vm132, %v117, 0
    %139 = vmatprep.subr.mxu0 0.0
    %140 = vmatpush1.msra.mxu0 0.0
    %141 = vmatprep.subr.mxu0 0.0
    %142 = vmatpush1.msra.mxu0 0.0
    %143 = vmatprep.subr.mxu0 0.0
    %144 = vmatpush1.msra.mxu0 0.0
    %145 = vmatprep.subr.mxu0 0.0
    %146 = vmatpush1.msra.mxu0 0.0
    %147 = vmatprep.subr.mxu0 0.0
    %148 = vmatpush1.msra.mxu0 0.0
    %149 = vmatprep.subr.mxu0 0.0
    %150 = vmatpush1.msra.mxu0 0.0
    %151 = vmatprep.subr.mxu0 0.0
    %152 = vmatpush1.msra.mxu0 0.0
    %153 = vmatprep.subr.mxu0 0.0
    %154 = vmatpush1.msra.mxu0 0.0
    %155 = vmatprep.subr.mxu0 0.0
    %156 = vmatpush1.msra.mxu0 0.0
    %157 = vmatprep.subr.mxu0 0.0
    %158 = vmatpush1.msra.mxu0 0.0
    %159 = vmatprep.subr.mxu0 0.0
    %160 = vmatpush1.msra.mxu0 0.0
    %161 = vmatprep.subr.mxu0 0.0
    %162 = vmatpush1.msra.mxu0 0.0
    %163 = vmatprep.subr.mxu0 0.0
    %164 = vmatpush1.msra.mxu0 0.0
    %165 = vmatprep.subr.mxu0 0.0
    %166 = vmatpush1.msra.mxu0 0.0
    %167 = vmatprep.subr.mxu0 0.0
    %168 = vmatpush1.msra.mxu0 0.0
    %169 = vmatprep.subr.mxu0 0.0
    %170 = vmatpush1.msra.mxu0 %v52
    %171 = vmatprep.subr.mxu0 0.0
    %172 = vmatpush2.msra.mxu0 0.0
    %173 = vmatprep.subr.mxu0 0.0
    %174 = vmatpush2.msra.mxu0 0.0
    %175 = vmatprep.subr.mxu0 0.0
    %176 = vmatpush2.msra.mxu0 0.0
    %177 = vmatprep.subr.mxu0 0.0
    %178 = vmatpush2.msra.mxu0 0.0
    %179 = vmatprep.subr.mxu0 0.0
    %180 = vmatpush2.msra.mxu0 0.0
    %181 = vmatprep.subr.mxu0 0.0
    %182 = vmatpush2.msra.mxu0 0.0
    %183 = vmatprep.subr.mxu0 0.0
    %184 = vmatpush2.msra.mxu0 0.0
    %185 = vmatprep.subr.mxu0 0.0
    %186 = vmatpush2.msra.mxu0 0.0
    %187 = vmatprep.subr.mxu0 0.0
    %188 = vmatpush2.msra.mxu0 0.0
    %189 = vmatprep.subr.mxu0 0.0
    %190 = vmatpush2.msra.mxu0 0.0
    %191 = vmatprep.subr.mxu0 0.0
    %192 = vmatpush2.msra.mxu0 0.0
    %193 = vmatprep.subr.mxu0 0.0
    %194 = vmatpush2.msra.mxu0 0.0
    %195 = vmatprep.subr.mxu0 0.0
    %196 = vmatpush2.msra.mxu0 0.0
    %197 = vmatprep.subr.mxu0 0.0
    %198 = vmatpush2.msra.mxu0 0.0
    %199 = vmatprep.subr.mxu0 0.0
    %200 = vmatpush2.msra.mxu0 0.0
    %201 = vmatprep.subr.mxu0 0.0
    %202 = vmatpush2.msra.mxu0 0.0
    %203 = vmatprep.mubr.f32.mxu0 0.0
    %204 = vmatmul.mubr.f32.gmra.mxu0 %v134
    %v205 = vpop.f32.mrf.mxu0
    %v206 = vadd.f32 0.0, %v205
    %v207 = vpop.f32.mrf.mxu0
    %208 = vmatprep.mubr.f32.mxu0 0.0
    %209 = vmatmul.mubr.f32.gmra.mxu0 %v137
    %v210 = vpop.f32.mrf.mxu0
    %v211 = vadd.f32 0.0, %v210
    %v212 = vpop.f32.mrf.mxu0
    %213 = vdwg.mxu0
    %v214 = vadd.f32 %v98, %v206
    %v215 = vadd.f32 %v99, %v211
    %216 = vst.msk [vmem:[#allocation2] sm:$0xff] %vm55, %v214
    %217 = vst.msk [vmem:[#allocation2 + $0x8] sm:$0xff] %vm55, %v215
    %v218 = vld [vmem:[#allocation3] sm:$0xff]
    %v219 = vld [vmem:[#allocation3 + $0x8] sm:$0xff]
    %220 = vmatprep.subr.mxu0 0.0
    %221 = vmatpush1.msra.mxu0 0.0
    %222 = vmatprep.subr.mxu0 0.0
    %223 = vmatpush1.msra.mxu0 0.0
    %224 = vmatprep.subr.mxu0 0.0
    %225 = vmatpush1.msra.mxu0 0.0
    %226 = vmatprep.subr.mxu0 0.0
    %227 = vmatpush1.msra.mxu0 0.0
    %228 = vmatprep.subr.mxu0 0.0
    %229 = vmatpush1.msra.mxu0 0.0
    %230 = vmatprep.subr.mxu0 0.0
    %231 = vmatpush1.msra.mxu0 0.0
    %232 = vmatprep.subr.mxu0 0.0
    %233 = vmatpush1.msra.mxu0 0.0
    %234 = vmatprep.subr.mxu0 0.0
    %235 = vmatpush1.msra.mxu0 0.0
    %236 = vmatprep.subr.mxu0 0.0
    %237 = vmatpush1.msra.mxu0 0.0
    %238 = vmatprep.subr.mxu0 0.0
    %239 = vmatpush1.msra.mxu0 0.0
    %240 = vmatprep.subr.mxu0 0.0
    %241 = vmatpush1.msra.mxu0 0.0
    %242 = vmatprep.subr.mxu0 0.0
    %243 = vmatpush1.msra.mxu0 0.0
    %244 = vmatprep.subr.mxu0 0.0
    %245 = vmatpush1.msra.mxu0 0.0
    %246 = vmatprep.subr.mxu0 0.0
    %247 = vmatpush1.msra.mxu0 0.0
    %248 = vmatprep.subr.mxu0 0.0
    %249 = vmatpush1.msra.mxu0 0.0
    %250 = vmatprep.subr.mxu0 0.0
    %251 = vmatpush1.msra.mxu0 %v53
    %252 = vmatprep.subr.mxu0 0.0
    %253 = vmatpush2.msra.mxu0 0.0
    %254 = vmatprep.subr.mxu0 0.0
    %255 = vmatpush2.msra.mxu0 0.0
    %256 = vmatprep.subr.mxu0 0.0
    %257 = vmatpush2.msra.mxu0 0.0
    %258 = vmatprep.subr.mxu0 0.0
    %259 = vmatpush2.msra.mxu0 0.0
    %260 = vmatprep.subr.mxu0 0.0
    %261 = vmatpush2.msra.mxu0 0.0
    %262 = vmatprep.subr.mxu0 0.0
    %263 = vmatpush2.msra.mxu0 0.0
    %264 = vmatprep.subr.mxu0 0.0
    %265 = vmatpush2.msra.mxu0 0.0
    %266 = vmatprep.subr.mxu0 0.0
    %267 = vmatpush2.msra.mxu0 0.0
    %268 = vmatprep.subr.mxu0 0.0
    %269 = vmatpush2.msra.mxu0 0.0
    %270 = vmatprep.subr.mxu0 0.0
    %271 = vmatpush2.msra.mxu0 0.0
    %272 = vmatprep.subr.mxu0 0.0
    %273 = vmatpush2.msra.mxu0 0.0
    %274 = vmatprep.subr.mxu0 0.0
    %275 = vmatpush2.msra.mxu0 0.0
    %276 = vmatprep.subr.mxu0 0.0
    %277 = vmatpush2.msra.mxu0 0.0
    %278 = vmatprep.subr.mxu0 0.0
    %279 = vmatpush2.msra.mxu0 0.0
    %280 = vmatprep.subr.mxu0 0.0
    %281 = vmatpush2.msra.mxu0 0.0
    %282 = vmatprep.subr.mxu0 0.0
    %283 = vmatpush2.msra.mxu0 0.0
    %284 = vmatprep.mubr.f32.mxu0 0.0
    %285 = vmatmul.mubr.f32.gmra.mxu0 %v134
    %v286 = vpop.f32.mrf.mxu0
    %v287 = vadd.f32 0.0, %v286
    %v288 = vpop.f32.mrf.mxu0
    %289 = vmatprep.mubr.f32.mxu0 0.0
    %290 = vmatmul.mubr.f32.gmra.mxu0 %v137
    %v291 = vpop.f32.mrf.mxu0
    %v292 = vadd.f32 0.0, %v291
    %v293 = vpop.f32.mrf.mxu0
    %294 = vdwg.mxu0
    %v295 = vadd.f32 %v218, %v287
    %v296 = vadd.f32 %v219, %v292
    %297 = vst.msk [vmem:[#allocation3] sm:$0xff] %vm55, %v295
    %298 = vst.msk [vmem:[#allocation3 + $0x8] sm:$0xff] %vm55, %v296
    %v299 = vld [vmem:[#allocation4] sm:$0xff]
    %v300 = vld [vmem:[#allocation4 + $0x8] sm:$0xff]
    %301 = vxpose.xlu0.b32.start [1/16] %v53, 128
    %302 = vxpose.xlu0.b32.cont [2/16] 0.0, 128
    %303 = vxpose.xlu0.b32.cont [3/16] 0.0, 128
    %304 = vxpose.xlu0.b32.cont [4/16] 0.0, 128
    %305 = vxpose.xlu0.b32.cont [5/16] 0.0, 128
    %306 = vxpose.xlu0.b32.cont [6/16] 0.0, 128
    %307 = vxpose.xlu0.b32.cont [7/16] 0.0, 128
    %308 = vxpose.xlu0.b32.cont [8/16] 0.0, 128
    %309 = vxpose.xlu0.b32.cont [9/16] 0.0, 128
    %310 = vxpose.xlu0.b32.cont [10/16] 0.0, 128
    %311 = vxpose.xlu0.b32.cont [11/16] 0.0, 128
    %312 = vxpose.xlu0.b32.cont [12/16] 0.0, 128
    %313 = vxpose.xlu0.b32.cont [13/16] 0.0, 128
    %314 = vxpose.xlu0.b32.cont [14/16] 0.0, 128
    %315 = vxpose.xlu0.b32.cont [15/16] 0.0, 128
    %316 = vxpose.xlu0.b32.end [16/16] 0.0, 128
    %v317 = vpop.trf.xlu0
    %v318 = vpop.trf.xlu0
    %v319 = vpop.trf.xlu0
    %v320 = vpop.trf.xlu0
    %v321 = vpop.trf.xlu0
    %v322 = vpop.trf.xlu0
    %v323 = vpop.trf.xlu0
    %v324 = vpop.trf.xlu0
    %v325 = vpop.trf.xlu0
    %v326 = vpop.trf.xlu0
    %v327 = vpop.trf.xlu0
    %v328 = vpop.trf.xlu0
    %v329 = vpop.trf.xlu0
    %v330 = vpop.trf.xlu0
    %v331 = vpop.trf.xlu0
    %v332 = vpop.trf.xlu0
    %v334 = vsel %vm132, %v317, 0
    %v337 = vsel %vm132, %v318, 0
    %339 = vmatprep.subr.mxu0 0.0
    %340 = vmatpush1.msra.mxu0 0.0
    %341 = vmatprep.subr.mxu0 0.0
    %342 = vmatpush1.msra.mxu0 0.0
    %343 = vmatprep.subr.mxu0 0.0
    %344 = vmatpush1.msra.mxu0 0.0
    %345 = vmatprep.subr.mxu0 0.0
    %346 = vmatpush1.msra.mxu0 0.0
    %347 = vmatprep.subr.mxu0 0.0
    %348 = vmatpush1.msra.mxu0 0.0
    %349 = vmatprep.subr.mxu0 0.0
    %350 = vmatpush1.msra.mxu0 0.0
    %351 = vmatprep.subr.mxu0 0.0
    %352 = vmatpush1.msra.mxu0 0.0
    %353 = vmatprep.subr.mxu0 0.0
    %354 = vmatpush1.msra.mxu0 0.0
    %355 = vmatprep.subr.mxu0 0.0
    %356 = vmatpush1.msra.mxu0 0.0
    %357 = vmatprep.subr.mxu0 0.0
    %358 = vmatpush1.msra.mxu0 0.0
    %359 = vmatprep.subr.mxu0 0.0
    %360 = vmatpush1.msra.mxu0 0.0
    %361 = vmatprep.subr.mxu0 0.0
    %362 = vmatpush1.msra.mxu0 0.0
    %363 = vmatprep.subr.mxu0 0.0
    %364 = vmatpush1.msra.mxu0 0.0
    %365 = vmatprep.subr.mxu0 0.0
    %366 = vmatpush1.msra.mxu0 0.0
    %367 = vmatprep.subr.mxu0 0.0
    %368 = vmatpush1.msra.mxu0 0.0
    %369 = vmatprep.subr.mxu0 0.0
    %370 = vmatpush1.msra.mxu0 %v53
    %371 = vmatprep.subr.mxu0 0.0
    %372 = vmatpush2.msra.mxu0 0.0
    %373 = vmatprep.subr.mxu0 0.0
    %374 = vmatpush2.msra.mxu0 0.0
    %375 = vmatprep.subr.mxu0 0.0
    %376 = vmatpush2.msra.mxu0 0.0
    %377 = vmatprep.subr.mxu0 0.0
    %378 = vmatpush2.msra.mxu0 0.0
    %379 = vmatprep.subr.mxu0 0.0
    %380 = vmatpush2.msra.mxu0 0.0
    %381 = vmatprep.subr.mxu0 0.0
    %382 = vmatpush2.msra.mxu0 0.0
    %383 = vmatprep.subr.mxu0 0.0
    %384 = vmatpush2.msra.mxu0 0.0
    %385 = vmatprep.subr.mxu0 0.0
    %386 = vmatpush2.msra.mxu0 0.0
    %387 = vmatprep.subr.mxu0 0.0
    %388 = vmatpush2.msra.mxu0 0.0
    %389 = vmatprep.subr.mxu0 0.0
    %390 = vmatpush2.msra.mxu0 0.0
    %391 = vmatprep.subr.mxu0 0.0
    %392 = vmatpush2.msra.mxu0 0.0
    %393 = vmatprep.subr.mxu0 0.0
    %394 = vmatpush2.msra.mxu0 0.0
    %395 = vmatprep.subr.mxu0 0.0
    %396 = vmatpush2.msra.mxu0 0.0
    %397 = vmatprep.subr.mxu0 0.0
    %398 = vmatpush2.msra.mxu0 0.0
    %399 = vmatprep.subr.mxu0 0.0
    %400 = vmatpush2.msra.mxu0 0.0
    %401 = vmatprep.subr.mxu0 0.0
    %402 = vmatpush2.msra.mxu0 0.0
    %403 = vmatprep.mubr.f32.mxu0 0.0
    %404 = vmatmul.mubr.f32.gmra.mxu0 %v334
    %v405 = vpop.f32.mrf.mxu0
    %v406 = vadd.f32 0.0, %v405
    %v407 = vpop.f32.mrf.mxu0
    %408 = vmatprep.mubr.f32.mxu0 0.0
    %409 = vmatmul.mubr.f32.gmra.mxu0 %v337
    %v410 = vpop.f32.mrf.mxu0
    %v411 = vadd.f32 0.0, %v410
    %v412 = vpop.f32.mrf.mxu0
    %413 = vdwg.mxu0
    %v414 = vadd.f32 %v299, %v406
    %v415 = vadd.f32 %v300, %v411
    %416 = vst.msk [vmem:[#allocation4] sm:$0xff] %vm55, %v414
    %417 = vst.msk [vmem:[#allocation4 + $0x8] sm:$0xff] %vm55, %v415
    // Predicated region
    $region22: #{tpu_custom_call.1} parent=1 // pred_check
      %p418 = pneg %p36
    $region23: #{tpu_custom_call.1} parent=1 // pred_check_branch
      %420 = sbr.rel (%p418) target = $region25
    $region24: #{tpu_custom_call.1} parent=1 // pred_region
      %v421 = vld [vmem:[#allocation2] sm:$0xff]
      %v422 = vld [vmem:[#allocation2 + $0x8] sm:$0xff]
      %v423 = vld [vmem:[#allocation3] sm:$0xff]
      %v424 = vld [vmem:[#allocation3 + $0x8] sm:$0xff]
      %v425 = vld [vmem:[#allocation4] sm:$0xff]
      %v426 = vld [vmem:[#allocation4 + $0x8] sm:$0xff]
      %v427 = vld [vmem:[#allocation5] sm:$0x1]
      %v428 = vsel %vm64, %v427, 0.0
      %429 = vadd.xlane.f32.xlu0 %v428
      %v430 = vpop.xlane.xlu0 %429
      %v431 = vrot.slane %v430, 4
      %v432 = vadd.f32 %v430, %v431
      %v433 = vrot.slane %v432, 2
      %v434 = vadd.f32 %v432, %v433
      %v435 = vrot.slane %v434, 1
      %v436 = vadd.f32 %v434, %v435
      %s437 = vtos %v436
      %v438 = vstv %s437
      %v439 = vrcp.pop %v438
      %v440 = vmul.f32 %v427, %v439
      %v441 = vmax.f32 %v440, 1e-30
      %v442 = vlog2.pop %v441
      %v443 = vmul.f32 %v442, 0.6931472
      %v444 = vmul.f32 %v440, %v443
      %v445 = vsel %vm64, %v444, 0.0
      %446 = vadd.xlane.f32.xlu0 %v445
      %v447 = vpop.xlane.xlu0 %446
      %v448 = vrot.slane %v447, 4
      %v449 = vadd.f32 %v447, %v448
      %v450 = vrot.slane %v449, 2
      %v451 = vadd.f32 %v449, %v450
      %v452 = vrot.slane %v451, 1
      %v453 = vadd.f32 %v451, %v452
      %s454 = vtos %v453
      %s455 = sadd.f32 %s454, 2.7725887
      %v456 = vld [vmem:[#allocation6] sm:$0x1]
      %v457 = vsel %vm64, %v456, 0.0
      %458 = vadd.xlane.f32.xlu0 %v457
      %v459 = vpop.xlane.xlu0 %458
      %v460 = vrot.slane %v459, 4
      %v461 = vadd.f32 %v459, %v460
      %v462 = vrot.slane %v461, 2
      %v463 = vadd.f32 %v461, %v462
      %v464 = vrot.slane %v463, 1
      %v465 = vadd.f32 %v463, %v464
      %s466 = vtos %v465
      %v467 = vstv %s466
      %v468 = vrcp.pop %v467
      %v469 = vmul.f32 %v456, %v468
      %v470 = vmax.f32 %v469, 1e-30
      %v471 = vlog2.pop %v470
      %v472 = vmul.f32 %v471, 0.6931472
      %v473 = vmul.f32 %v469, %v472
      %v474 = vsel %vm64, %v473, 0.0
      %475 = vadd.xlane.f32.xlu0 %v474
      %v476 = vpop.xlane.xlu0 %475
      %v477 = vrot.slane %v476, 4
      %v478 = vadd.f32 %v476, %v477
      %v479 = vrot.slane %v478, 2
      %v480 = vadd.f32 %v478, %v479
      %v481 = vrot.slane %v480, 1
      %v482 = vadd.f32 %v480, %v481
      %s483 = vtos %v482
      %s484 = sadd.f32 %s483, 2.7725887
      %s485 = sadd.f32 %s455, %s484
      %v486 = vlaneseq
      %v487 = vshrl.u32 %v486, 7
      %v488 = vadd.s32 %v487, 8
      %v489 = vlaneseq
      %v490 = vand.u32 %v489, 127
      %vm491 = vcmp.eq.s32.totalorder %v487, %v490
      %vm492 = vcmp.eq.s32.totalorder %v488, %v490
      %v493 = vsel %vm491, %v421, 0.0
      %v494 = vsel %vm492, %v422, 0.0
      %v495 = vsel %vm55, %v493, 0.0
      %496 = vadd.xlane.f32.xlu0 %v495
      %v497 = vpop.xlane.xlu0 %496
      %v498 = vsel %vm55, %v494, 0.0
      %499 = vadd.xlane.f32.xlu0 %v498
      %v500 = vpop.xlane.xlu0 %499
      %v501 = vsel %vm491, %v425, 0.0
      %v502 = vsel %vm492, %v426, 0.0
      %v503 = vsel %vm55, %v501, 0.0
      %504 = vadd.xlane.f32.xlu0 %v503
      %v505 = vpop.xlane.xlu0 %504
      %v506 = vsel %vm55, %v502, 0.0
      %507 = vadd.xlane.f32.xlu0 %v506
      %v508 = vpop.xlane.xlu0 %507
      %v509 = vrsqrt.pop %v497
      %v510 = vmul.f32 %v497, %v509
      %vm511 = vcmp.eq.f32.partialorder %v497, inf
      %v512 = vsel %vm511, %v497, %v510
      %vm513 = vcmp.eq.f32.partialorder %v497, 0.0
      %v514 = vand.u32 %v497, 2147483648
      %v515 = vsel %vm513, %v514, %v512
      %v516 = vrsqrt.pop %v500
      %v517 = vmul.f32 %v500, %v516
      %vm518 = vcmp.eq.f32.partialorder %v500, inf
      %v519 = vsel %vm518, %v500, %v517
      %vm520 = vcmp.eq.f32.partialorder %v500, 0.0
      %v521 = vand.u32 %v500, 2147483648
      %v522 = vsel %vm520, %v521, %v519
      %v523 = vmax.f32 %v515, 1e-12
      %v524 = vmax.f32 %v522, 1e-12
      %v525 = vrcp.pop %v523
      %v526 = vmul.f32 1.0, %v525
      %v527 = vrcp.pop %v524
      %v528 = vmul.f32 1.0, %v527
      %v529 = vrsqrt.pop %v505
      %v530 = vmul.f32 %v505, %v529
      %vm531 = vcmp.eq.f32.partialorder %v505, inf
      %v532 = vsel %vm531, %v505, %v530
      %vm533 = vcmp.eq.f32.partialorder %v505, 0.0
      %v534 = vand.u32 %v505, 2147483648
      %v535 = vsel %vm533, %v534, %v532
      %v536 = vrsqrt.pop %v508
      %v537 = vmul.f32 %v508, %v536
      %vm538 = vcmp.eq.f32.partialorder %v508, inf
      %v539 = vsel %vm538, %v508, %v537
      %vm540 = vcmp.eq.f32.partialorder %v508, 0.0
      %v541 = vand.u32 %v508, 2147483648
      %v542 = vsel %vm540, %v541, %v539
      %v543 = vmax.f32 %v535, 1e-12
      %v544 = vmax.f32 %v542, 1e-12
      %v545 = vrcp.pop %v543
      %v546 = vmul.f32 1.0, %v545
      %v547 = vrcp.pop %v544
      %v548 = vmul.f32 1.0, %v547
      %v549 = vld [vmem:[#allocation7] sm:$0x1]
      %v550 = vrsqrt.pop %v549
      %v551 = vmul.f32 %v549, %v550
      %vm552 = vcmp.eq.f32.partialorder %v549, inf
      %v553 = vsel %vm552, %v549, %v551
      %vm554 = vcmp.eq.f32.partialorder %v549, 0.0
      %v555 = vand.u32 %v549, 2147483648
      %v556 = vsel %vm554, %v555, %v553
      %v557 = vmax.f32 %v556, 1e-12
      %v558 = vrcp.pop %v557
      %v559 = vmul.f32 1.0, %v558
      %v560 = vld [vmem:[#allocation8] sm:$0x1]
      %v561 = vrsqrt.pop %v560
      %v562 = vmul.f32 %v560, %v561
      %vm563 = vcmp.eq.f32.partialorder %v560, inf
      %v564 = vsel %vm563, %v560, %v562
      %vm565 = vcmp.eq.f32.partialorder %v560, 0.0
      %v566 = vand.u32 %v560, 2147483648
      %v567 = vsel %vm565, %v566, %v564
      %v568 = vmax.f32 %v567, 1e-12
      %v569 = vrcp.pop %v568
      %v570 = vmul.f32 1.0, %v569
      %v572 = vlaneseq
      %v573 = vshrl.u32 %v572, 7
      %v574 = vsub.s32 0, %v573
      %v575 = vrot.slane %v559, %v574
      %v577 = vmul.f32 %v526, %v575
      %v578 = vmul.f32 %v528, %v575
      %v579 = vmul.f32 %v421, %v577
      %v580 = vmul.f32 %v422, %v578
      %v582 = vlaneseq
      %v583 = vshrl.u32 %v582, 7
      %v584 = vsub.s32 0, %v583
      %v585 = vrot.slane %v570, %v584
      %v587 = vmul.f32 %v526, %v585
      %v588 = vmul.f32 %v528, %v585
      %v589 = vmul.f32 %v423, %v587
      %v590 = vmul.f32 %v424, %v588
      %v591 = vmul.f32 %v546, %v585
      %v592 = vmul.f32 %v548, %v585
      %v593 = vmul.f32 %v425, %v591
      %v594 = vmul.f32 %v426, %v592
      %v595 = vsel %vm491, -10000.0, %v579
      %v596 = vsel %vm492, -10000.0, %v580
      %v597 = vsel %vm491, -10000.0, %v593
      %v598 = vsel %vm492, -10000.0, %v594
      %v599 = vsel %vm55, %v595, -inf
      %600 = vmax.xlane.f32.xlu0 %v599
      %v601 = vpop.xlane.xlu0 %600
      %v602 = vsel %vm55, %v596, -inf
      %603 = vmax.xlane.f32.xlu0 %v602
      %v604 = vpop.xlane.xlu0 %603
      %v605 = vsel %vm55, %v589, -inf
      %606 = vmax.xlane.f32.xlu0 %v605
      %v607 = vpop.xlane.xlu0 %606
      %v608 = vsel %vm55, %v590, -inf
      %609 = vmax.xlane.f32.xlu0 %v608
      %v610 = vpop.xlane.xlu0 %609
      %v611 = vmax.f32 %v601, %v607
      %v612 = vmax.f32 %v604, %v610
      %v613 = vsub.f32 %v595, %v611
      %v614 = vsub.f32 %v596, %v612
      %v615 = vmul.f32 %v613, 1.442695
      %v616 = vpow.pop %v615
      %v617 = vmul.f32 %v614, 1.442695
      %v618 = vpow.pop %v617
      %v619 = vsel %vm55, %v616, 0.0
      %620 = vadd.xlane.f32.xlu0 %v619
      %v621 = vpop.xlane.xlu0 %620
      %v622 = vsel %vm55, %v618, 0.0
      %623 = vadd.xlane.f32.xlu0 %v622
      %v624 = vpop.xlane.xlu0 %623
      %v625 = vsub.f32 %v589, %v611
      %v626 = vsub.f32 %v590, %v612
      %v627 = vmul.f32 %v625, 1.442695
      %v628 = vpow.pop %v627
      %v629 = vmul.f32 %v626, 1.442695
      %v630 = vpow.pop %v629
      %v631 = vsel %vm55, %v628, 0.0
      %632 = vadd.xlane.f32.xlu0 %v631
      %v633 = vpop.xlane.xlu0 %632
      %v634 = vsel %vm55, %v630, 0.0
      %635 = vadd.xlane.f32.xlu0 %v634
      %v636 = vpop.xlane.xlu0 %635
      %v637 = vadd.f32 %v621, %v633
      %v638 = vadd.f32 %v624, %v636
      %v639 = vlog2.pop %v637
      %v640 = vmul.f32 %v639, 0.6931472
      %v641 = vlog2.pop %v638
      %v642 = vmul.f32 %v641, 0.6931472
      %v643 = vadd.f32 %v640, %v611
      %v644 = vadd.f32 %v642, %v612
      %v645 = vmax.f32 %v605, %v608
      %v646 = vrot.slane %v645, 4
      %v647 = vmax.f32 %v645, %v646
      %v648 = vrot.slane %v647, 2
      %v649 = vmax.f32 %v647, %v648
      %v650 = vrot.slane %v649, 1
      %v651 = vmax.f32 %v649, %v650
      %v652 = vsel %vm55, %v597, -inf
      %v653 = vsel %vm55, %v598, -inf
      %v654 = vmax.f32 %v652, %v653
      %v655 = vrot.slane %v654, 4
      %v656 = vmax.f32 %v654, %v655
      %v657 = vrot.slane %v656, 2
      %v658 = vmax.f32 %v656, %v657
      %v659 = vrot.slane %v658, 1
      %v660 = vmax.f32 %v658, %v659
      %v661 = vmax.f32 %v651, %v660
      %v662 = vsub.f32 %v589, %v661
      %v663 = vsub.f32 %v590, %v661
      %v664 = vmul.f32 %v662, 1.442695
      %v665 = vpow.pop %v664
      %v666 = vmul.f32 %v663, 1.442695
      %v667 = vpow.pop %v666
      %v668 = vsel %vm55, %v665, 0.0
      %v669 = vsel %vm55, %v667, 0.0
      %v670 = vadd.f32 %v668, %v669
      %v671 = vrot.slane %v670, 4
      %v672 = vadd.f32 %v670, %v671
      %v673 = vrot.slane %v672, 2
      %v674 = vadd.f32 %v672, %v673
      %v675 = vrot.slane %v674, 1
      %v676 = vadd.f32 %v674, %v675
      %v677 = vsub.f32 %v597, %v661
      %v678 = vsub.f32 %v598, %v661
      %v679 = vmul.f32 %v677, 1.442695
      %v680 = vpow.pop %v679
      %v681 = vmul.f32 %v678, 1.442695
      %v682 = vpow.pop %v681
      %v683 = vsel %vm55, %v680, 0.0
      %v684 = vsel %vm55, %v682, 0.0
      %v685 = vadd.f32 %v683, %v684
      %v686 = vrot.slane %v685, 4
      %v687 = vadd.f32 %v685, %v686
      %v688 = vrot.slane %v687, 2
      %v689 = vadd.f32 %v687, %v688
      %v690 = vrot.slane %v689, 1
      %v691 = vadd.f32 %v689, %v690
      %v692 = vadd.f32 %v676, %v691
      %v693 = vlog2.pop %v692
      %v694 = vmul.f32 %v693, 0.6931472
      %v695 = vadd.f32 %v694, %v661
      %v696 = vsel %vm491, %v589, 0.0
      %v697 = vsel %vm492, %v590, 0.0
      %v698 = vsel %vm55, %v696, 0.0
      %v699 = vsel %vm55, %v697, 0.0
      %v700 = vadd.f32 %v698, %v699
      %701 = vadd.xlane.f32.xlu0 %v700
      %v702 = vpop.xlane.xlu0 %701
      %v703 = vrot.slane %v702, 4
      %v704 = vadd.f32 %v702, %v703
      %v705 = vrot.slane %v704, 2
      %v706 = vadd.f32 %v704, %v705
      %v707 = vrot.slane %v706, 1
      %v708 = vadd.f32 %v706, %v707
      %s709 = vtos %v708
      %s710 = smul.f32 %s709, 2.0
      %vm711 = vcmask 7168
      %v712 = vsel %vm711, %v643, 0.0
      %v713 = vsel %vm711, %v644, 0.0
      %v714 = vadd.f32 %v712, %v713
      %715 = vadd.xlane.f32.xlu0 %v714
      %v716 = vpop.xlane.xlu0 %715
      %v717 = vrot.slane %v716, 4
      %v718 = vadd.f32 %v716, %v717
      %v719 = vrot.slane %v718, 2
      %v720 = vadd.f32 %v718, %v719
      %v721 = vrot.slane %v720, 1
      %v722 = vadd.f32 %v720, %v721
      %s723 = vtos %v722
      %s724 = ssub.f32 %s710, %s723
      %v725 = vsel %vm64, %v695, 0.0
      %726 = vadd.xlane.f32.xlu0 %v725
      %v727 = vpop.xlane.xlu0 %726
      %v728 = vrot.slane %v727, 4
      %v729 = vadd.f32 %v727, %v728
      %v730 = vrot.slane %v729, 2
      %v731 = vadd.f32 %v729, %v730
      %v732 = vrot.slane %v731, 1
      %v733 = vadd.f32 %v731, %v732
      %s734 = vtos %v733
      %s735 = ssub.f32 %s724, %s734
      %s736 = ssub.f32 0.0, %s735
      %v737 = vrcp.pop 32.0
      %s738 = vtos %v737
      %s739 = smul.f32 %s736, %s738
      %s740 = sadd.f32 %s739, %s485
      %s741 = scalar_lea.smem [#allocation14], 0
      %742 = sst [smem:[%s741]] %s740
    $region25: #{tpu_custom_call.1} parent=1 // pred_fallthru
      _
    // Predicated region
    $region26: #{tpu_custom_call.1} parent=1 // pred_check
      _
    $region27: #{tpu_custom_call.1} parent=1 // pred_check_branch
      %744 = sbr.rel (0) target = $region29
    $region28: #{tpu_custom_call.1} parent=1 // pred_region
      %s746 = ssub.s32 16, 16
      %747 = vsyncadd [#allocation11], %s746
      %750 = dma.smem_to_hbm [#allocation14], 16, %s2, [#allocation11]
    $region29: #{tpu_custom_call.1} parent=1 // pred_fallthru
      _
    // Predicated region
    $region30: #{tpu_custom_call.1} parent=1 // pred_check
      _
    $region31: #{tpu_custom_call.1} parent=1 // pred_check_branch
      %752 = sbr.rel (0) target = $region33
    $region32: #{tpu_custom_call.1} parent=1 // pred_region
      %753 = dma.done [#allocation11], 16
    $region33: #{tpu_custom_call.1} parent=1 // pred_fallthru
      _
    %754 = sfence
    %755 = vsyncpa [#allocation10], 1
    %756 = vsyncpa [#allocation13], 1
    %757 = vsyncpa [#allocation11], 1

</llo_original>
